<compile_context>
chip_gen: v7x
topology: tpu7x:2x2x1
jax: 0.10.0
libtpu: 0.0.40
codegen_flags: <defaults>
</compile_context>

<pallas_src>
import numpy as np
import jax
import jax.numpy as jnp
from jax import lax
from jax.experimental import pallas as pl
from jax.experimental.pallas import tpu as pltpu

EPS = 1e-5


# ---------------------------------------------------------------------------
# Pass 1 (grid over batches of Nb images): depthwise 3x3 (stride=1, pad=1) in
# the folded (H, W*Cin) lane layout + lane-dense batch statistics.
#   x_ref    : (Nb, H, W*Cin)      unpadded input, W folded into lanes
#   wdw_ref  : (9,  W*Cin)         depthwise taps, tiled across W
#   acc_ref  : (Nb, H, W*Cin)      depthwise output
#   stats_ref: (W*Cin+8, W*Cin)    rows 0..WC-1 = Gram A^T A of this block,
#                                  row WC = per-lane column sums, rest zero.
# ---------------------------------------------------------------------------
def make_dw_stats_kernel(Cin, H, Wdim):
    WC = Wdim * Cin
    f32 = jnp.float32

    def kernel(x_ref, wdw_ref, acc_ref, stats_ref):
        Nb = x_ref.shape[0]
        x = x_ref[...]
        w9 = wdw_ref[...]                              # read once (hoisted)

        # Lane-shifted column views (dw = -1, 0, +1), hoisted out of the tap
        # loop; a column shift of dw is a lane shift of dw*Cin, zero halo.
        zcol = jnp.zeros((Nb, H, Cin), f32)
        xm1 = jnp.concatenate([zcol, x[:, :, :WC - Cin]], axis=2)   # x at w-1
        xp1 = jnp.concatenate([x[:, :, Cin:], zcol], axis=2)        # x at w+1
        cols = (xm1, x, xp1)

        zrow = jnp.zeros((Nb, 1, WC), f32)

        def rshift(v, dh):                  # out row h sees v row h+dh (zero halo)
            if dh < 0:
                return jnp.concatenate([zrow, v[:, :H - 1, :]], axis=1)
            if dh > 0:
                return jnp.concatenate([v[:, 1:, :], zrow], axis=1)
            return v

        acc = None
        for t in range(9):                  # 3x3 taps, fully unrolled
            dh, dw = t // 3 - 1, t % 3 - 1
            tap = rshift(cols[dw + 1], dh) * w9[t, :][None, None, :]
            acc = tap if acc is None else acc + tap
        acc_ref[...] = acc

        # Lane-dense statistics for this block: raw (WC,WC) Gram + column sums.
        # (The tiny (Cin,Cin) fold of the Gram happens on the host.)
        a2 = acc.reshape(Nb * H, WC)
        gram = lax.dot_general(a2, a2, (((0,), (0,)), ((), ())),
                               preferred_element_type=f32)           # (WC, WC)
        colsum = jnp.sum(a2, axis=0, keepdims=True)                  # (1, WC)
        stats_ref[...] = jnp.concatenate(
            [gram, colsum, jnp.zeros((7, WC), f32)], axis=0)

    return kernel


# ---------------------------------------------------------------------------
# Pass 2 (grid over row blocks of N*H): 1x1 conv + BN0 + BN1 folded into one
# MXU matmul against a block-diagonal weight generated in-kernel (no HBM
# (W*Cin, W*Cout) table).
#   acc_ref : (TM, W*Cin)
#   wf_ref  : (Cin, Cout)    dense effective pointwise weight (BN0/BN1 folded)
#   bias_ref: (1, W*Cout)    effective bias, tiled across W
#   out_ref : (TM, W*Cout)   lane-dense output (multiple of 128 lanes)
# ---------------------------------------------------------------------------
def make_pw_bn_kernel(Cin, Cout, Wdim):
    WCin, WCout = Wdim * Cin, Wdim * Cout
    f32 = jnp.float32

    def kernel(acc_ref, wf_ref, bias_ref, out_ref):
        # w_blk[i, j] = W_final[i % Cin, j % Cout] * (i // Cin == j // Cout)
        ri = lax.broadcasted_iota(jnp.int32, (WCin, 1), 0) % Cin
        rc = lax.broadcasted_iota(jnp.int32, (1, Cin), 1)
        rep_rows = (ri == rc).astype(f32)                        # (WCin, Cin)
        ck = lax.broadcasted_iota(jnp.int32, (Cout, 1), 0)
        cj = lax.broadcasted_iota(jnp.int32, (1, WCout), 1) % Cout
        rep_cols = (ck == cj).astype(f32)                        # (Cout, WCout)
        tiled = jnp.dot(jnp.dot(rep_rows, wf_ref[...],
                                preferred_element_type=f32),
                        rep_cols, preferred_element_type=f32)    # (WCin, WCout)
        bi = lax.broadcasted_iota(jnp.int32, (WCin, 1), 0) // Cin
        bj = lax.broadcasted_iota(jnp.int32, (1, WCout), 1) // Cout
        w_blk = jnp.where(bi == bj, tiled, 0.0)

        out_ref[...] = (jnp.dot(acc_ref[...], w_blk,
                                preferred_element_type=f32)
                        + bias_ref[...])

    return kernel


def _largest_divisor_leq(n, cap):
    d = max(1, min(n, cap))
    while n % d:
        d -= 1
    return d


def basic_block_forward(x_nchw, wdw, wpw, g0, b0, g1, b1):
    """x_nchw: (N, Cin, H, W); wdw: (Cin,1,3,3); wpw: (Cout,Cin,1,1)."""
    N, Cin, H, W = x_nchw.shape
    Cout = wpw.shape[0]
    WC_in, WC_out = W * Cin, W * Cout
    f32 = jnp.float32

    # NCHW -> folded (N, H, W*Cin). One XLA transpose, kept only to honour
    # the PyTorch module's NCHW interface.
    # TODO(synk): accept NHWC / folded (H, W*C) input directly to drop this
    # extra HBM pass (and the matching output transpose).
    x_f = jnp.transpose(x_nchw, (0, 2, 3, 1)).astype(f32).reshape(N, H, WC_in)

    # Depthwise weights: (Cin,1,3,3) -> (9, Cin) -> tiled across W -> (9, W*Cin)
    wdw9 = jnp.transpose(wdw.reshape(Cin, 9), (1, 0)).astype(f32)
    wdw_t = jnp.tile(wdw9, (1, W))

    # Pass-1 block size: Nb images per step (target ~256 rows of work per
    # step once N is large enough); Nb must divide N.
    Nb = _largest_divisor_leq(N, max(1, 256 // H))
    G = N // Nb

    cp = pltpu.CompilerParams(
        dimension_semantics=("parallel",),           # megacore over grid steps
        vmem_limit_bytes=32 * 1024 * 1024)           # safe on v5e/v6e/v7x

    acc, stats = pl.pallas_call(
        make_dw_stats_kernel(Cin, H, W),
        out_shape=(jax.ShapeDtypeStruct((N, H, WC_in), f32),
                   jax.ShapeDtypeStruct((G, WC_in + 8, WC_in), f32)),
        grid=(G,),
        in_specs=[pl.BlockSpec((Nb, H, WC_in), lambda n: (n, 0, 0)),
                  pl.BlockSpec((9, WC_in), lambda n: (0, 0))],
        out_specs=(pl.BlockSpec((Nb, H, WC_in), lambda n: (n, 0, 0)),
                   pl.BlockSpec((None, WC_in + 8, WC_in), lambda n: (n, 0, 0))),
        compiler_params=cp,
    )(x_f, wdw_t)

    # ---- tiny O(C^2) host-side glue: fold BOTH BatchNorms (training-mode
    #      batch stats, biased variance) into one (Cin, Cout) weight + bias.
    #      NOTE: variances use E[x^2]-E[x]^2 (fine for activations that are
    #      not mean-dominated; exact enough for this block's semantics).
    npos = float(N * H * W)
    ssum = jnp.sum(stats, axis=0)                     # (WC_in+8, WC_in)
    gram = ssum[:WC_in, :]                            # folded second moments
    sums_c = ssum[WC_in, :].reshape(W, Cin).sum(axis=0)              # (Cin,)
    g4 = gram.reshape(W, Cin, W, Cin)
    M = jnp.einsum('wcvd,wv->cd', g4, jnp.eye(W, dtype=f32))         # (Cin, Cin)

    mean0 = sums_c / npos
    var0 = jnp.diagonal(M) / npos - mean0 * mean0
    s0 = g0 * lax.rsqrt(var0 + EPS)
    shift0 = b0 - mean0 * s0

    wpw2 = jnp.transpose(wpw.reshape(Cout, Cin), (1, 0)).astype(f32)  # (Cin, Cout)
    W_eff = s0[:, None] * wpw2                        # BN0 folded into 1x1 weight
    beta = shift0 @ wpw2                              # (Cout,)

    # Exact BN1 batch statistics of z = acc @ W_eff + beta from the moments.
    mean1 = mean0 @ W_eff + beta
    e_z2 = (jnp.einsum('cj,cd,dj->j', W_eff, M / npos, W_eff)
            + 2.0 * beta * (mean0 @ W_eff) + beta * beta)
    var1 = e_z2 - mean1 * mean1
    s1 = g1 * lax.rsqrt(var1 + EPS)
    shift1 = b1 - mean1 * s1

    W_final = (W_eff * s1[None, :]).astype(f32)       # (Cin, Cout)
    b_final = beta * s1 + shift1                      # (Cout,)
    b_tiled = jnp.tile(b_final, W)[None, :].astype(f32)   # (1, W*Cout)

    # ---- Pass 2: one lane-dense matmul over the (N*H) row axis.
    NH = N * H
    acc2 = acc.reshape(NH, WC_in)                     # free reshape
    TM = _largest_divisor_leq(NH, 512)                # M >= 256 once NH allows

    out_f = pl.pallas_call(
        make_pw_bn_kernel(Cin, Cout, W),
        out_shape=jax.ShapeDtypeStruct((NH, WC_out), f32),
        grid=(NH // TM,),
        in_specs=[pl.BlockSpec((TM, WC_in), lambda i: (i, 0)),
                  pl.BlockSpec((Cin, Cout), lambda i: (0, 0)),
                  pl.BlockSpec((1, WC_out), lambda i: (0, 0))],
        out_specs=pl.BlockSpec((TM, WC_out), lambda i: (i, 0)),
        compiler_params=cp,
    )(acc2, W_final, b_tiled)

    out_nhwc = out_f.reshape(N, H, W, Cout)
    return jnp.transpose(out_nhwc, (0, 3, 1, 2))      # back to NCHW


def reference_forward(x_nchw, wdw, wpw, g0, b0, g1, b1):
    """Pure-JAX reference mirroring the PyTorch module (training-mode BN)."""
    Cin = x_nchw.shape[1]
    out = lax.conv_general_dilated(
        x_nchw, wdw, (1, 1), ((1, 1), (1, 1)),
        dimension_numbers=("NCHW", "OIHW", "NCHW"), feature_group_count=Cin)

    def bn(t, g, b):
        m = t.mean(axis=(0, 2, 3), keepdims=True)
        v = ((t - m) ** 2).mean(axis=(0, 2, 3), keepdims=True)
        return (t - m) / jnp.sqrt(v + EPS) * g.reshape(1, -1, 1, 1) + b.reshape(1, -1, 1, 1)

    out = bn(out, g0, b0)
    out = lax.conv_general_dilated(
        out, wpw, (1, 1), ((0, 0), (0, 0)),
        dimension_numbers=("NCHW", "OIHW", "NCHW"))
    out = bn(out, g1, b1)
    return out


if __name__ == "__main__":
    N, Cin, Cout, H, W = 2, 8, 16, 16, 16      # W*Cin = 128 (exact lane width)

    key = jax.random.PRNGKey(0)
    kx, kdw, kpw, kg0, kb0, kg1, kb1 = jax.random.split(key, 7)

    x = jax.random.normal(kx, (N, Cin, H, W), jnp.float32)
    wdw = jax.random.normal(kdw, (Cin, 1, 3, 3), jnp.float32) * 0.1   # depthwise (groups=Cin)
    wpw = jax.random.normal(kpw, (Cout, Cin, 1, 1), jnp.float32) * 0.1
    g0 = 1.0 + 0.1 * jax.random.normal(kg0, (Cin,), jnp.float32)
    b0 = 0.1 * jax.random.normal(kb0, (Cin,), jnp.float32)
    g1 = 1.0 + 0.1 * jax.random.normal(kg1, (Cout,), jnp.float32)
    b1 = 0.1 * jax.random.normal(kb1, (Cout,), jnp.float32)

    out = basic_block_forward(x, wdw, wpw, g0, b0, g1, b1)
    out = jax.block_until_ready(out)

    ref = jax.block_until_ready(reference_forward(x, wdw, wpw, g0, b0, g1, b1))
    assert out.shape == (N, Cout, H, W)
    np.testing.assert_allclose(np.asarray(out), np.asarray(ref), atol=5e-4, rtol=5e-4)

    print("KERNEL_OK")
</pallas_src>

<mosaic_0001>
module attributes {stable_mosaic.version = 11 : i64} {
  func.func @kernel(%arg0: i32, %arg1: memref<2x16x128xf32, #tpu.memory_space<vmem>>, %arg2: memref<9x128xf32, #tpu.memory_space<vmem>>, %arg3: memref<2x16x128xf32, #tpu.memory_space<vmem>>, %arg4: memref<1x136x128xf32, #tpu.memory_space<vmem>>) attributes {dimension_semantics = [#tpu.dimension_semantics<parallel>], iteration_bounds = array<i64: 1>, scalar_prefetch = 0 : i64, scratch_operands = 0 : i64, tpu.core_type = #tpu.core_type<tc>, window_params = [{transform_indices = @transform_0, window_bounds = array<i64: 2, 16, 128>}, {pipeline_mode = #tpu.pipeline_mode<synchronous>, transform_indices = @transform_1, window_bounds = array<i64: 9, 128>}, {transform_indices = @transform_2, window_bounds = array<i64: 2, 16, 128>}, {transform_indices = @transform_3, window_bounds = array<i64: 1, 136, 128>}]} {
    %c0 = arith.constant 0 : index
    %c0_0 = arith.constant 0 : index
    %c0_1 = arith.constant 0 : index
    %0 = vector.load %arg1[%c0, %c0_0, %c0_1] : memref<2x16x128xf32, #tpu.memory_space<vmem>>, vector<2x16x128xf32>
    %c0_2 = arith.constant 0 : index
    %c0_3 = arith.constant 0 : index
    %1 = vector.load %arg2[%c0_2, %c0_3] : memref<9x128xf32, #tpu.memory_space<vmem>>, vector<9x128xf32>
    %cst = arith.constant 0.000000e+00 : f32
    %2 = vector.broadcast %cst : f32 to vector<2x16x8xf32>
    %3 = vector.extract_strided_slice %0 {offsets = [0, 0, 0], sizes = [2, 16, 120], strides = [1, 1, 1]} : vector<2x16x128xf32> to vector<2x16x120xf32>
    %4 = tpu.concatenate %2, %3 in 2 : vector<2x16x8xf32>, vector<2x16x120xf32> -> vector<2x16x128xf32>
    %5 = vector.extract_strided_slice %0 {offsets = [0, 0, 8], sizes = [2, 16, 120], strides = [1, 1, 1]} : vector<2x16x128xf32> to vector<2x16x120xf32>
    %6 = tpu.concatenate %5, %2 in 2 : vector<2x16x120xf32>, vector<2x16x8xf32> -> vector<2x16x128xf32>
    %cst_4 = arith.constant 0.000000e+00 : f32
    %7 = vector.broadcast %cst_4 : f32 to vector<2x1x128xf32>
    %8 = vector.extract_strided_slice %4 {offsets = [0, 0, 0], sizes = [2, 15, 128], strides = [1, 1, 1]} : vector<2x16x128xf32> to vector<2x15x128xf32>
    %9 = tpu.concatenate %7, %8 in 1 : vector<2x1x128xf32>, vector<2x15x128xf32> -> vector<2x16x128xf32>
    %10 = vector.extract_strided_slice %1 {offsets = [0, 0], sizes = [1, 128], strides = [1, 1]} : vector<9x128xf32> to vector<1x128xf32>
    %11 = vector.shape_cast %10 : vector<1x128xf32> to vector<128xf32>
    %12 = vector.shape_cast %11 : vector<128xf32> to vector<1x1x128xf32>
    %13 = vector.broadcast %12 : vector<1x1x128xf32> to vector<2x16x128xf32>
    %14 = arith.mulf %9, %13 : vector<2x16x128xf32>
    %15 = vector.extract_strided_slice %0 {offsets = [0, 0, 0], sizes = [2, 15, 128], strides = [1, 1, 1]} : vector<2x16x128xf32> to vector<2x15x128xf32>
    %16 = tpu.concatenate %7, %15 in 1 : vector<2x1x128xf32>, vector<2x15x128xf32> -> vector<2x16x128xf32>
    %17 = vector.extract_strided_slice %1 {offsets = [1, 0], sizes = [1, 128], strides = [1, 1]} : vector<9x128xf32> to vector<1x128xf32>
    %18 = vector.shape_cast %17 : vector<1x128xf32> to vector<128xf32>
    %19 = vector.shape_cast %18 : vector<128xf32> to vector<1x1x128xf32>
    %20 = vector.broadcast %19 : vector<1x1x128xf32> to vector<2x16x128xf32>
    %21 = arith.mulf %16, %20 : vector<2x16x128xf32>
    %22 = arith.addf %14, %21 : vector<2x16x128xf32>
    %23 = vector.extract_strided_slice %6 {offsets = [0, 0, 0], sizes = [2, 15, 128], strides = [1, 1, 1]} : vector<2x16x128xf32> to vector<2x15x128xf32>
    %24 = tpu.concatenate %7, %23 in 1 : vector<2x1x128xf32>, vector<2x15x128xf32> -> vector<2x16x128xf32>
    %25 = vector.extract_strided_slice %1 {offsets = [2, 0], sizes = [1, 128], strides = [1, 1]} : vector<9x128xf32> to vector<1x128xf32>
    %26 = vector.shape_cast %25 : vector<1x128xf32> to vector<128xf32>
    %27 = vector.shape_cast %26 : vector<128xf32> to vector<1x1x128xf32>
    %28 = vector.broadcast %27 : vector<1x1x128xf32> to vector<2x16x128xf32>
    %29 = arith.mulf %24, %28 : vector<2x16x128xf32>
    %30 = arith.addf %22, %29 : vector<2x16x128xf32>
    %31 = vector.extract_strided_slice %1 {offsets = [3, 0], sizes = [1, 128], strides = [1, 1]} : vector<9x128xf32> to vector<1x128xf32>
    %32 = vector.shape_cast %31 : vector<1x128xf32> to vector<128xf32>
    %33 = vector.shape_cast %32 : vector<128xf32> to vector<1x1x128xf32>
    %34 = vector.broadcast %33 : vector<1x1x128xf32> to vector<2x16x128xf32>
    %35 = arith.mulf %4, %34 : vector<2x16x128xf32>
    %36 = arith.addf %30, %35 : vector<2x16x128xf32>
    %37 = vector.extract_strided_slice %1 {offsets = [4, 0], sizes = [1, 128], strides = [1, 1]} : vector<9x128xf32> to vector<1x128xf32>
    %38 = vector.shape_cast %37 : vector<1x128xf32> to vector<128xf32>
    %39 = vector.shape_cast %38 : vector<128xf32> to vector<1x1x128xf32>
    %40 = vector.broadcast %39 : vector<1x1x128xf32> to vector<2x16x128xf32>
    %41 = arith.mulf %0, %40 : vector<2x16x128xf32>
    %42 = arith.addf %36, %41 : vector<2x16x128xf32>
    %43 = vector.extract_strided_slice %1 {offsets = [5, 0], sizes = [1, 128], strides = [1, 1]} : vector<9x128xf32> to vector<1x128xf32>
    %44 = vector.shape_cast %43 : vector<1x128xf32> to vector<128xf32>
    %45 = vector.shape_cast %44 : vector<128xf32> to vector<1x1x128xf32>
    %46 = vector.broadcast %45 : vector<1x1x128xf32> to vector<2x16x128xf32>
    %47 = arith.mulf %6, %46 : vector<2x16x128xf32>
    %48 = arith.addf %42, %47 : vector<2x16x128xf32>
    %49 = vector.extract_strided_slice %4 {offsets = [0, 1, 0], sizes = [2, 15, 128], strides = [1, 1, 1]} : vector<2x16x128xf32> to vector<2x15x128xf32>
    %50 = tpu.concatenate %49, %7 in 1 : vector<2x15x128xf32>, vector<2x1x128xf32> -> vector<2x16x128xf32>
    %51 = vector.extract_strided_slice %1 {offsets = [6, 0], sizes = [1, 128], strides = [1, 1]} : vector<9x128xf32> to vector<1x128xf32>
    %52 = vector.shape_cast %51 : vector<1x128xf32> to vector<128xf32>
    %53 = vector.shape_cast %52 : vector<128xf32> to vector<1x1x128xf32>
    %54 = vector.broadcast %53 : vector<1x1x128xf32> to vector<2x16x128xf32>
    %55 = arith.mulf %50, %54 : vector<2x16x128xf32>
    %56 = arith.addf %48, %55 : vector<2x16x128xf32>
    %57 = vector.extract_strided_slice %0 {offsets = [0, 1, 0], sizes = [2, 15, 128], strides = [1, 1, 1]} : vector<2x16x128xf32> to vector<2x15x128xf32>
    %58 = tpu.concatenate %57, %7 in 1 : vector<2x15x128xf32>, vector<2x1x128xf32> -> vector<2x16x128xf32>
    %59 = vector.extract_strided_slice %1 {offsets = [7, 0], sizes = [1, 128], strides = [1, 1]} : vector<9x128xf32> to vector<1x128xf32>
    %60 = vector.shape_cast %59 : vector<1x128xf32> to vector<128xf32>
    %61 = vector.shape_cast %60 : vector<128xf32> to vector<1x1x128xf32>
    %62 = vector.broadcast %61 : vector<1x1x128xf32> to vector<2x16x128xf32>
    %63 = arith.mulf %58, %62 : vector<2x16x128xf32>
    %64 = arith.addf %56, %63 : vector<2x16x128xf32>
    %65 = vector.extract_strided_slice %6 {offsets = [0, 1, 0], sizes = [2, 15, 128], strides = [1, 1, 1]} : vector<2x16x128xf32> to vector<2x15x128xf32>
    %66 = tpu.concatenate %65, %7 in 1 : vector<2x15x128xf32>, vector<2x1x128xf32> -> vector<2x16x128xf32>
    %67 = vector.extract_strided_slice %1 {offsets = [8, 0], sizes = [1, 128], strides = [1, 1]} : vector<9x128xf32> to vector<1x128xf32>
    %68 = vector.shape_cast %67 : vector<1x128xf32> to vector<128xf32>
    %69 = vector.shape_cast %68 : vector<128xf32> to vector<1x1x128xf32>
    %70 = vector.broadcast %69 : vector<1x1x128xf32> to vector<2x16x128xf32>
    %71 = arith.mulf %66, %70 : vector<2x16x128xf32>
    %72 = arith.addf %64, %71 : vector<2x16x128xf32>
    %c0_5 = arith.constant 0 : index
    %c0_6 = arith.constant 0 : index
    %c0_7 = arith.constant 0 : index
    %73 = vector.load %arg3[%c0_5, %c0_6, %c0_7] : memref<2x16x128xf32, #tpu.memory_space<vmem>>, vector<2x16x128xf32>
    tpu.vector_store %arg3[%c0_5, %c0_6, %c0_7], %72 {strides = array<i32>} : memref<2x16x128xf32, #tpu.memory_space<vmem>>, vector<2x16x128xf32>,
    %74 = vector.shape_cast %72 : vector<2x16x128xf32> to vector<32x128xf32>
    %cst_8 = arith.constant dense<0.000000e+00> : vector<128x128xf32>
    %75 = tpu.matmul %74, %74, %cst_8 {dimension_numbers = #tpu.dot_dimension_numbers<[0], [0], [1], [1], [0, 1, 1, 1], [], []>} : vector<32x128xf32>, vector<32x128xf32>, vector<128x128xf32> -> vector<128x128xf32>
    %cst_9 = arith.constant dense<0.000000e+00> : vector<128xf32>
    %76 = vector.multi_reduction <add>, %74, %cst_9 [0] : vector<32x128xf32> to vector<128xf32>
    %77 = vector.shape_cast %76 : vector<128xf32> to vector<1x128xf32>
    %cst_10 = arith.constant 0.000000e+00 : f32
    %78 = vector.broadcast %cst_10 : f32 to vector<7x128xf32>
    %79 = tpu.concatenate %75, %77, %78 in 0 : vector<128x128xf32>, vector<1x128xf32>, vector<7x128xf32> -> vector<136x128xf32>
    %c0_11 = arith.constant 0 : index
    %c0_12 = arith.constant 0 : index
    %c0_13 = arith.constant 0 : index
    %80 = vector.load %arg4[%c0_11, %c0_12, %c0_13] : memref<1x136x128xf32, #tpu.memory_space<vmem>>, vector<1x136x128xf32>
    %81 = vector.shape_cast %80 : vector<1x136x128xf32> to vector<136x128xf32>
    %82 = vector.shape_cast %79 : vector<136x128xf32> to vector<1x136x128xf32>
    tpu.vector_store %arg4[%c0_11, %c0_12, %c0_13], %82 {strides = array<i32>} : memref<1x136x128xf32, #tpu.memory_space<vmem>>, vector<1x136x128xf32>,
    return
  }
  func.func @transform_0(%arg0: i32) -> (i32, i32, i32) {
    %c0_i32 = arith.constant 0 : i32
    %c0_i32_0 = arith.constant 0 : i32
    %c0_i32_1 = arith.constant 0 : i32
    return %arg0, %c0_i32, %c0_i32_0 : i32, i32, i32
  }
  func.func @transform_1(%arg0: i32) -> (i32, i32) {
    %c0_i32 = arith.constant 0 : i32
    %c0_i32_0 = arith.constant 0 : i32
    %c0_i32_1 = arith.constant 0 : i32
    return %c0_i32, %c0_i32_0 : i32, i32
  }
  func.func @transform_2(%arg0: i32) -> (i32, i32, i32) {
    %c0_i32 = arith.constant 0 : i32
    %c0_i32_0 = arith.constant 0 : i32
    %c0_i32_1 = arith.constant 0 : i32
    return %arg0, %c0_i32, %c0_i32_0 : i32, i32, i32
  }
  func.func @transform_3(%arg0: i32) -> (i32, i32, i32) {
    %c0_i32 = arith.constant 0 : i32
    %c0_i32_0 = arith.constant 0 : i32
    %c0_i32_1 = arith.constant 0 : i32
    return %arg0, %c0_i32, %c0_i32_0 : i32, i32, i32
  }
}

</mosaic_0001>

<llo_original>
// kernel: tpu_custom_call.1
$region0: #{tpu_custom_call.1}
  #allocation0 [shape = 'u32[]', space=smem, size = 0x4, offset = 0x4, fixed_abs, tag = 'smem constant byte address 0x4 - core index']
  #allocation1 [shape = 'u32[144,128]{1,0:T(1,128)}', space=vmem, size = 0x12000, scoped, tag = 'internal scratch']
  %s0 = inlined_call_operand.hbm [shape: f32[2,16,128], index: 0, kind: input, shape index: {}]
  %s1 = inlined_call_operand.hbm [shape: f32[9,128], index: 1, kind: input, shape index: {}]
  %s2 = inlined_call_operand.hbm [shape: f32[2,16,128], index: 2, kind: output, shape index: {0}]
  %s3 = inlined_call_operand.hbm [shape: f32[1,136,128], index: 3, kind: output, shape index: {1}]
  %4 = xla_tuple %s2, %s3
  %s5 = sld [smem:[#allocation0]]
  $region34: #{tpu_custom_call.1} parent=0
    _
  %s7 = ssub.s32 1, %s5
  %s8 = scalar_select 0, %s7, %s5
  $region1: #{tpu_custom_call.1} parent=0
    #allocation2 [shape = 'u8[16384]{0}', space=vmem, size = 0x4000, scoped, tag = 'input window, operand 0, single buffered']
    #allocation3 [shape = 's32[1]{0}', space=sflag, size = 0x4, scoped, tag = 'scoped memory for tpu_custom_call.1']
    #allocation4 [shape = 's32[1]{0}', space=sflag, size = 0x4, scoped, tag = 'scoped memory for tpu_custom_call.1']
    #allocation5 [shape = 'u8[8192]{0}', space=vmem, size = 0x2000, scoped, tag = 'input window, operand 1, single buffered']
    #allocation6 [shape = 's32[1]{0}', space=sflag, size = 0x4, scoped, tag = 'scoped memory for tpu_custom_call.1']
    #allocation7 [shape = 'u8[16384]{0}', space=vmem, size = 0x4000, scoped, tag = 'output window, operand 0, single buffered']
    #allocation8 [shape = 'u8[69632]{0}', space=vmem, size = 0x11000, scoped, tag = 'output window, operand 1, single buffered']
    #allocation9 [shape = 's32[1]{0}', space=sflag, size = 0x4, scoped, tag = 'scoped memory for tpu_custom_call.1']
    %9 = vsyncpa [#allocation3], 0
    %10 = vsyncpa [#allocation6], 0
    %11 = vsyncpa [#allocation4], 0
    %12 = vsyncpa [#allocation9], 0
    // Predicated region
    $region2: #{tpu_custom_call.1} parent=1 // pred_check
      _
    $region3: #{tpu_custom_call.1} parent=1 // pred_check_branch
      %14 = sbr.rel (0) target = $region5
    $region4: #{tpu_custom_call.1} parent=1 // pred_region
      %s16 = ssub.s32 512, 512
      %17 = vsyncadd [#allocation3], %s16
      %s18 = sshll.u32 [#allocation2], 4
      %s19 = int_to_ptr.vmem [resolvable:$true] %s18
      %24 = dma.hbm_to_vmem [thread:$0]  %s0, 512, %s19, [#allocation3], 128, 128, 8
    $region5: #{tpu_custom_call.1} parent=1 // pred_fallthru
      _
    // Predicated region
    $region6: #{tpu_custom_call.1} parent=1 // pred_check
      _
    $region7: #{tpu_custom_call.1} parent=1 // pred_check_branch
      %26 = sbr.rel (0) target = $region9
    $region8: #{tpu_custom_call.1} parent=1 // pred_region
      %s28 = ssub.s32 256, 256
      %29 = vsyncadd [#allocation6], %s28
      %s30 = sshll.u32 [#allocation5], 4
      %s31 = int_to_ptr.vmem [resolvable:$true] %s30
      %36 = dma.hbm_to_vmem [thread:$0]  %s1, 256, %s31, [#allocation6], 128, 128, 8
    $region9: #{tpu_custom_call.1} parent=1 // pred_fallthru
      _
    // Predicated region
    $region10: #{tpu_custom_call.1} parent=1 // pred_check
      _
    $region11: #{tpu_custom_call.1} parent=1 // pred_check_branch
      %38 = sbr.rel (0) target = $region13
    $region12: #{tpu_custom_call.1} parent=1 // pred_region
      %39 = dma.done [#allocation3], 512
    $region13: #{tpu_custom_call.1} parent=1 // pred_fallthru
      _
    // Predicated region
    $region14: #{tpu_custom_call.1} parent=1 // pred_check
      _
    $region15: #{tpu_custom_call.1} parent=1 // pred_check_branch
      %41 = sbr.rel (0) target = $region17
    $region16: #{tpu_custom_call.1} parent=1 // pred_region
      %42 = dma.done [#allocation6], 256
    $region17: #{tpu_custom_call.1} parent=1 // pred_fallthru
      _
    %v43 = vld [vmem:[#allocation2] sm:$0xff]
    %v44 = vld [vmem:[#allocation2 + $0x8] sm:$0xff]
    %v45 = vld [vmem:[#allocation2 + $0x10] sm:$0xff]
    %v46 = vld [vmem:[#allocation2 + $0x18] sm:$0xff]
    %v47 = vld [vmem:[#allocation5] sm:$0xff]
    %v48 = vld [vmem:[#allocation5 + $0x8] sm:$0x1]
    %53 = vrot.lane.b32.xlu0 %v43, 8
    %v54 = vpop.permute.xlu0 %53
    %55 = vrot.lane.b32.xlu0 %v44, 8
    %v56 = vpop.permute.xlu0 %55
    %57 = vrot.lane.b32.xlu0 %v45, 8
    %v58 = vpop.permute.xlu0 %57
    %59 = vrot.lane.b32.xlu0 %v46, 8
    %v60 = vpop.permute.xlu0 %59
    %vm65 = vcmask 64512
    %v66 = vsel %vm65, 0.0, %v54
    %v67 = vsel %vm65, 0.0, %v56
    %v68 = vsel %vm65, 0.0, %v58
    %v69 = vsel %vm65, 0.0, %v60
    %70 = vrot.lane.b32.xlu0 %v43, 120
    %v71 = vpop.permute.xlu0 %70
    %72 = vrot.lane.b32.xlu0 %v44, 120
    %v73 = vpop.permute.xlu0 %72
    %74 = vrot.lane.b32.xlu0 %v45, 120
    %v75 = vpop.permute.xlu0 %74
    %76 = vrot.lane.b32.xlu0 %v46, 120
    %v77 = vpop.permute.xlu0 %76
    %vm82 = vcmask 982016
    %v83 = vsel %vm82, %v71, 0.0
    %v84 = vsel %vm82, %v73, 0.0
    %v85 = vsel %vm82, %v75, 0.0
    %v86 = vsel %vm82, %v77, 0.0
    %vm91 = vcmask 1040384
    %v92 = vrot.slane %v66, 7
    %v93 = vrot.slane %v67, 7
    %v94 = vsel %vm91, %v92, %v93
    %v95 = vrot.slane %v68, 7
    %v96 = vrot.slane %v69, 7
    %v97 = vsel %vm91, %v95, %v96
    %v102 = vsel %vm91, 0.0, %v92
    %v103 = vsel %vm91, 0.0, %v95
    %v104 = vlaneseq
    %v105 = vshrl.u32 %v104, 7
    %v106 = vsub.s32 0, %v105
    %v107 = vrot.slane %v47, %v106
    %v108 = vmul.f32 %v102, %v107
    %v109 = vmul.f32 %v94, %v107
    %v110 = vmul.f32 %v103, %v107
    %v111 = vmul.f32 %v97, %v107
    %v112 = vrot.slane %v43, 7
    %v113 = vrot.slane %v44, 7
    %v114 = vsel %vm91, %v112, %v113
    %v115 = vrot.slane %v45, 7
    %v116 = vrot.slane %v46, 7
    %v117 = vsel %vm91, %v115, %v116
    %v122 = vsel %vm91, 0.0, %v112
    %v123 = vsel %vm91, 0.0, %v115
    %v124 = vlaneseq
    %v125 = vshrl.u32 %v124, 7
    %v126 = vsub.s32 1, %v125
    %v127 = vrot.slane %v47, %v126
    %v128 = vmul.f32 %v122, %v127
    %v129 = vmul.f32 %v114, %v127
    %v130 = vmul.f32 %v123, %v127
    %v131 = vmul.f32 %v117, %v127
    %v132 = vadd.f32 %v108, %v128
    %v133 = vadd.f32 %v109, %v129
    %v134 = vadd.f32 %v110, %v130
    %v135 = vadd.f32 %v111, %v131
    %v140 = vrot.slane %v83, 7
    %v141 = vrot.slane %v84, 7
    %v142 = vsel %vm91, %v140, %v141
    %v143 = vrot.slane %v85, 7
    %v144 = vrot.slane %v86, 7
    %v145 = vsel %vm91, %v143, %v144
    %v150 = vsel %vm91, 0.0, %v140
    %v151 = vsel %vm91, 0.0, %v143
    %v152 = vlaneseq
    %v153 = vshrl.u32 %v152, 7
    %v154 = vsub.s32 2, %v153
    %v155 = vrot.slane %v47, %v154
    %v156 = vmul.f32 %v150, %v155
    %v157 = vmul.f32 %v142, %v155
    %v158 = vmul.f32 %v151, %v155
    %v159 = vmul.f32 %v145, %v155
    %v160 = vadd.f32 %v132, %v156
    %v161 = vadd.f32 %v133, %v157
    %v162 = vadd.f32 %v134, %v158
    %v163 = vadd.f32 %v135, %v159
    %v164 = vlaneseq
    %v165 = vshrl.u32 %v164, 7
    %v166 = vsub.s32 3, %v165
    %v167 = vrot.slane %v47, %v166
    %v168 = vmul.f32 %v66, %v167
    %v169 = vmul.f32 %v67, %v167
    %v170 = vmul.f32 %v68, %v167
    %v171 = vmul.f32 %v69, %v167
    %v172 = vadd.f32 %v160, %v168
    %v173 = vadd.f32 %v161, %v169
    %v174 = vadd.f32 %v162, %v170
    %v175 = vadd.f32 %v163, %v171
    %v176 = vlaneseq
    %v177 = vshrl.u32 %v176, 7
    %v178 = vsub.s32 4, %v177
    %v179 = vrot.slane %v47, %v178
    %v180 = vmul.f32 %v43, %v179
    %v181 = vmul.f32 %v44, %v179
    %v182 = vmul.f32 %v45, %v179
    %v183 = vmul.f32 %v46, %v179
    %v184 = vadd.f32 %v172, %v180
    %v185 = vadd.f32 %v173, %v181
    %v186 = vadd.f32 %v174, %v182
    %v187 = vadd.f32 %v175, %v183
    %v188 = vlaneseq
    %v189 = vshrl.u32 %v188, 7
    %v190 = vsub.s32 5, %v189
    %v191 = vrot.slane %v47, %v190
    %v192 = vmul.f32 %v83, %v191
    %v193 = vmul.f32 %v84, %v191
    %v194 = vmul.f32 %v85, %v191
    %v195 = vmul.f32 %v86, %v191
    %v196 = vadd.f32 %v184, %v192
    %v197 = vadd.f32 %v185, %v193
    %v198 = vadd.f32 %v186, %v194
    %v199 = vadd.f32 %v187, %v195
    %vm200 = vcmask 1046528
    %v201 = vrot.slane %v66, 1
    %v202 = vrot.slane %v67, 1
    %v203 = vsel %vm200, %v201, %v202
    %v204 = vrot.slane %v68, 1
    %v205 = vrot.slane %v69, 1
    %v206 = vsel %vm200, %v204, %v205
    %v211 = vsel %vm200, %v202, 0.0
    %v212 = vsel %vm200, %v205, 0.0
    %v213 = vlaneseq
    %v214 = vshrl.u32 %v213, 7
    %v215 = vsub.s32 6, %v214
    %v216 = vrot.slane %v47, %v215
    %v217 = vmul.f32 %v203, %v216
    %v218 = vmul.f32 %v211, %v216
    %v219 = vmul.f32 %v206, %v216
    %v220 = vmul.f32 %v212, %v216
    %v221 = vadd.f32 %v196, %v217
    %v222 = vadd.f32 %v197, %v218
    %v223 = vadd.f32 %v198, %v219
    %v224 = vadd.f32 %v199, %v220
    %v225 = vrot.slane %v43, 1
    %v226 = vrot.slane %v44, 1
    %v227 = vsel %vm200, %v225, %v226
    %v228 = vrot.slane %v45, 1
    %v229 = vrot.slane %v46, 1
    %v230 = vsel %vm200, %v228, %v229
    %v235 = vsel %vm200, %v226, 0.0
    %v236 = vsel %vm200, %v229, 0.0
    %v237 = vlaneseq
    %v238 = vshrl.u32 %v237, 7
    %v239 = vsub.s32 7, %v238
    %v240 = vrot.slane %v47, %v239
    %v241 = vmul.f32 %v227, %v240
    %v242 = vmul.f32 %v235, %v240
    %v243 = vmul.f32 %v230, %v240
    %v244 = vmul.f32 %v236, %v240
    %v245 = vadd.f32 %v221, %v241
    %v246 = vadd.f32 %v222, %v242
    %v247 = vadd.f32 %v223, %v243
    %v248 = vadd.f32 %v224, %v244
    %v249 = vrot.slane %v83, 1
    %v250 = vrot.slane %v84, 1
    %v251 = vsel %vm200, %v249, %v250
    %v252 = vrot.slane %v85, 1
    %v253 = vrot.slane %v86, 1
    %v254 = vsel %vm200, %v252, %v253
    %v259 = vsel %vm200, %v250, 0.0
    %v260 = vsel %vm200, %v253, 0.0
    %v261 = vlaneseq
    %v262 = vshrl.u32 %v261, 7
    %v263 = vsub.s32 0, %v262
    %v264 = vrot.slane %v48, %v263
    %v265 = vmul.f32 %v251, %v264
    %v266 = vmul.f32 %v259, %v264
    %v267 = vmul.f32 %v254, %v264
    %v268 = vmul.f32 %v260, %v264
    %v269 = vadd.f32 %v245, %v265
    %v270 = vadd.f32 %v246, %v266
    %v271 = vadd.f32 %v247, %v267
    %v272 = vadd.f32 %v248, %v268
    %273 = vst [vmem:[#allocation7] sm:$0xff] %v269
    %274 = vst [vmem:[#allocation7 + $0x8] sm:$0xff] %v270
    %275 = vst [vmem:[#allocation7 + $0x10] sm:$0xff] %v271
    %276 = vst [vmem:[#allocation7 + $0x18] sm:$0xff] %v272
    %277 = vxpose.xlu0.b32.start [1/16] %v269, 128
    %278 = vxpose.xlu0.b32.cont [2/16] %v270, 128
    %279 = vxpose.xlu0.b32.cont [3/16] %v271, 128
    %280 = vxpose.xlu0.b32.cont [4/16] %v272, 128
    %281 = vxpose.xlu0.b32.cont [5/16] 0.0, 128
    %282 = vxpose.xlu0.b32.cont [6/16] 0.0, 128
    %283 = vxpose.xlu0.b32.cont [7/16] 0.0, 128
    %284 = vxpose.xlu0.b32.cont [8/16] 0.0, 128
    %285 = vxpose.xlu0.b32.cont [9/16] 0.0, 128
    %286 = vxpose.xlu0.b32.cont [10/16] 0.0, 128
    %287 = vxpose.xlu0.b32.cont [11/16] 0.0, 128
    %288 = vxpose.xlu0.b32.cont [12/16] 0.0, 128
    %289 = vxpose.xlu0.b32.cont [13/16] 0.0, 128
    %290 = vxpose.xlu0.b32.cont [14/16] 0.0, 128
    %291 = vxpose.xlu0.b32.cont [15/16] 0.0, 128
    %292 = vxpose.xlu0.b32.end [16/16] 0.0, 128
    %v293 = vpop.trf.xlu0
    %v294 = vpop.trf.xlu0
    %v295 = vpop.trf.xlu0
    %v296 = vpop.trf.xlu0
    %v297 = vpop.trf.xlu0
    %v298 = vpop.trf.xlu0
    %v299 = vpop.trf.xlu0
    %v300 = vpop.trf.xlu0
    %v301 = vpop.trf.xlu0
    %v302 = vpop.trf.xlu0
    %v303 = vpop.trf.xlu0
    %v304 = vpop.trf.xlu0
    %v305 = vpop.trf.xlu0
    %v306 = vpop.trf.xlu0
    %v307 = vpop.trf.xlu0
    %v308 = vpop.trf.xlu0
    %vm309 = vcmask 261120
    %v311 = vsel %vm309, %v293, 0
    %v314 = vsel %vm309, %v294, 0
    %v317 = vsel %vm309, %v295, 0
    %v320 = vsel %vm309, %v296, 0
    %v323 = vsel %vm309, %v297, 0
    %v326 = vsel %vm309, %v298, 0
    %v329 = vsel %vm309, %v299, 0
    %v332 = vsel %vm309, %v300, 0
    %v335 = vsel %vm309, %v301, 0
    %v338 = vsel %vm309, %v302, 0
    %v341 = vsel %vm309, %v303, 0
    %v344 = vsel %vm309, %v304, 0
    %v347 = vsel %vm309, %v305, 0
    %v350 = vsel %vm309, %v306, 0
    %v353 = vsel %vm309, %v307, 0
    %v356 = vsel %vm309, %v308, 0
    %358 = vmatprep.subr.mxu0 0.0
    %359 = vmatpush1.msra.mxu0 %v269
    %360 = vmatprep.subr.mxu0 0.0
    %361 = vmatpush1.msra.mxu0 %v270
    %362 = vmatprep.subr.mxu0 0.0
    %363 = vmatpush1.msra.mxu0 %v271
    %364 = vmatprep.subr.mxu0 0.0
    %365 = vmatpush1.msra.mxu0 %v272
    %366 = vmatprep.subr.mxu0 0.0
    %367 = vmatpush1.msra.mxu0 0.0
    %368 = vmatprep.subr.mxu0 0.0
    %369 = vmatpush1.msra.mxu0 0.0
    %370 = vmatprep.subr.mxu0 0.0
    %371 = vmatpush1.msra.mxu0 0.0
    %372 = vmatprep.subr.mxu0 0.0
    %373 = vmatpush1.msra.mxu0 0.0
    %374 = vmatprep.subr.mxu0 0.0
    %375 = vmatpush1.msra.mxu0 0.0
    %376 = vmatprep.subr.mxu0 0.0
    %377 = vmatpush1.msra.mxu0 0.0
    %378 = vmatprep.subr.mxu0 0.0
    %379 = vmatpush1.msra.mxu0 0.0
    %380 = vmatprep.subr.mxu0 0.0
    %381 = vmatpush1.msra.mxu0 0.0
    %382 = vmatprep.subr.mxu0 0.0
    %383 = vmatpush1.msra.mxu0 0.0
    %384 = vmatprep.subr.mxu0 0.0
    %385 = vmatpush1.msra.mxu0 0.0
    %386 = vmatprep.subr.mxu0 0.0
    %387 = vmatpush1.msra.mxu0 0.0
    %388 = vmatprep.subr.mxu0 0.0
    %389 = vmatpush1.msra.mxu0 0.0
    %390 = vmatprep.subr.mxu0 0.0
    %391 = vmatpush1.msra.mxu0 0.0
    %392 = vmatprep.subr.mxu0 0.0
    %393 = vmatpush1.msra.mxu0 0.0
    %394 = vmatprep.subr.mxu0 0.0
    %395 = vmatpush1.msra.mxu0 0.0
    %396 = vmatprep.subr.mxu0 0.0
    %397 = vmatpush1.msra.mxu0 0.0
    %398 = vmatprep.subr.mxu0 0.0
    %399 = vmatpush1.msra.mxu0 0.0
    %400 = vmatprep.subr.mxu0 0.0
    %401 = vmatpush1.msra.mxu0 0.0
    %402 = vmatprep.subr.mxu0 0.0
    %403 = vmatpush1.msra.mxu0 0.0
    %404 = vmatprep.subr.mxu0 0.0
    %405 = vmatpush1.msra.mxu0 0.0
    %406 = vmatprep.subr.mxu0 0.0
    %407 = vmatpush1.msra.mxu0 0.0
    %408 = vmatprep.subr.mxu0 0.0
    %409 = vmatpush1.msra.mxu0 0.0
    %410 = vmatprep.subr.mxu0 0.0
    %411 = vmatpush1.msra.mxu0 0.0
    %412 = vmatprep.subr.mxu0 0.0
    %413 = vmatpush1.msra.mxu0 0.0
    %414 = vmatprep.subr.mxu0 0.0
    %415 = vmatpush1.msra.mxu0 0.0
    %416 = vmatprep.subr.mxu0 0.0
    %417 = vmatpush1.msra.mxu0 0.0
    %418 = vmatprep.subr.mxu0 0.0
    %419 = vmatpush1.msra.mxu0 0.0
    %420 = vmatprep.subr.mxu0 0.0
    %421 = vmatpush1.msra.mxu0 0.0
    %422 = vmatprep.mubr.f32.mxu0 0.0
    %423 = vmatmul.mubr.f32.gmra.mrb[0].mxu0 %v311
    %v424 = vpop.f32.mrb[0].mxu0
    %v425 = vadd.f32 0.0, %v424
    %v426 = vpop.f32.mrb[0].mxu0
    %427 = vmatprep.mubr.f32.mxu0 0.0
    %428 = vmatmul.mubr.f32.gmra.mrb[0].mxu0 %v314
    %v429 = vpop.f32.mrb[0].mxu0
    %v430 = vadd.f32 0.0, %v429
    %v431 = vpop.f32.mrb[0].mxu0
    %432 = vmatprep.mubr.f32.mxu0 0.0
    %433 = vmatmul.mubr.f32.gmra.mrb[0].mxu0 %v317
    %v434 = vpop.f32.mrb[0].mxu0
    %v435 = vadd.f32 0.0, %v434
    %v436 = vpop.f32.mrb[0].mxu0
    %437 = vmatprep.mubr.f32.mxu0 0.0
    %438 = vmatmul.mubr.f32.gmra.mrb[0].mxu0 %v320
    %v439 = vpop.f32.mrb[0].mxu0
    %v440 = vadd.f32 0.0, %v439
    %v441 = vpop.f32.mrb[0].mxu0
    %442 = vmatprep.mubr.f32.mxu0 0.0
    %443 = vmatmul.mubr.f32.gmra.mrb[0].mxu0 %v323
    %v444 = vpop.f32.mrb[0].mxu0
    %v445 = vadd.f32 0.0, %v444
    %v446 = vpop.f32.mrb[0].mxu0
    %447 = vmatprep.mubr.f32.mxu0 0.0
    %448 = vmatmul.mubr.f32.gmra.mrb[0].mxu0 %v326
    %v449 = vpop.f32.mrb[0].mxu0
    %v450 = vadd.f32 0.0, %v449
    %v451 = vpop.f32.mrb[0].mxu0
    %452 = vmatprep.mubr.f32.mxu0 0.0
    %453 = vmatmul.mubr.f32.gmra.mrb[0].mxu0 %v329
    %v454 = vpop.f32.mrb[0].mxu0
    %v455 = vadd.f32 0.0, %v454
    %v456 = vpop.f32.mrb[0].mxu0
    %457 = vmatprep.mubr.f32.mxu0 0.0
    %458 = vmatmul.mubr.f32.gmra.mrb[0].mxu0 %v332
    %v459 = vpop.f32.mrb[0].mxu0
    %v460 = vadd.f32 0.0, %v459
    %v461 = vpop.f32.mrb[0].mxu0
    %462 = vmatprep.mubr.f32.mxu0 0.0
    %463 = vmatmul.mubr.f32.gmra.mrb[0].mxu0 %v335
    %v464 = vpop.f32.mrb[0].mxu0
    %v465 = vadd.f32 0.0, %v464
    %v466 = vpop.f32.mrb[0].mxu0
    %467 = vmatprep.mubr.f32.mxu0 0.0
    %468 = vmatmul.mubr.f32.gmra.mrb[0].mxu0 %v338
    %v469 = vpop.f32.mrb[0].mxu0
    %v470 = vadd.f32 0.0, %v469
    %v471 = vpop.f32.mrb[0].mxu0
    %472 = vmatprep.mubr.f32.mxu0 0.0
    %473 = vmatmul.mubr.f32.gmra.mrb[0].mxu0 %v341
    %v474 = vpop.f32.mrb[0].mxu0
    %v475 = vadd.f32 0.0, %v474
    %v476 = vpop.f32.mrb[0].mxu0
    %477 = vmatprep.mubr.f32.mxu0 0.0
    %478 = vmatmul.mubr.f32.gmra.mrb[0].mxu0 %v344
    %v479 = vpop.f32.mrb[0].mxu0
    %v480 = vadd.f32 0.0, %v479
    %v481 = vpop.f32.mrb[0].mxu0
    %482 = vmatprep.mubr.f32.mxu0 0.0
    %483 = vmatmul.mubr.f32.gmra.mrb[0].mxu0 %v347
    %v484 = vpop.f32.mrb[0].mxu0
    %v485 = vadd.f32 0.0, %v484
    %v486 = vpop.f32.mrb[0].mxu0
    %487 = vmatprep.mubr.f32.mxu0 0.0
    %488 = vmatmul.mubr.f32.gmra.mrb[0].mxu0 %v350
    %v489 = vpop.f32.mrb[0].mxu0
    %v490 = vadd.f32 0.0, %v489
    %v491 = vpop.f32.mrb[0].mxu0
    %492 = vmatprep.mubr.f32.mxu0 0.0
    %493 = vmatmul.mubr.f32.gmra.mrb[0].mxu0 %v353
    %v494 = vpop.f32.mrb[0].mxu0
    %v495 = vadd.f32 0.0, %v494
    %v496 = vpop.f32.mrb[0].mxu0
    %497 = vmatprep.mubr.f32.mxu0 0.0
    %498 = vmatmul.mubr.f32.gmra.mrb[0].mxu0 %v356
    %v499 = vpop.f32.mrb[0].mxu0
    %v500 = vadd.f32 0.0, %v499
    %v501 = vpop.f32.mrb[0].mxu0
    %502 = vdwg.mxu0
    %v503 = vadd.f32 %v269, %v270
    %v504 = vadd.f32 %v503, %v271
    %v505 = vadd.f32 %v504, %v272
    %v506 = vrot.slane %v505, 4
    %v507 = vadd.f32 %v505, %v506
    %v508 = vrot.slane %v507, 2
    %v509 = vadd.f32 %v507, %v508
    %v510 = vrot.slane %v509, 1
    %v511 = vadd.f32 %v509, %v510
    %v512 = vsel %vm91, %v511, 0.0
    %513 = vst [vmem:[#allocation8] sm:$0xff] %v425
    %514 = vst [vmem:[#allocation8 + $0x8] sm:$0xff] %v430
    %515 = vst [vmem:[#allocation8 + $0x10] sm:$0xff] %v435
    %516 = vst [vmem:[#allocation8 + $0x18] sm:$0xff] %v440
    %517 = vst [vmem:[#allocation8 + $0x20] sm:$0xff] %v445
    %518 = vst [vmem:[#allocation8 + $0x28] sm:$0xff] %v450
    %519 = vst [vmem:[#allocation8 + $0x30] sm:$0xff] %v455
    %520 = vst [vmem:[#allocation8 + $0x38] sm:$0xff] %v460
    %521 = vst [vmem:[#allocation8 + $0x40] sm:$0xff] %v465
    %522 = vst [vmem:[#allocation8 + $0x48] sm:$0xff] %v470
    %523 = vst [vmem:[#allocation8 + $0x50] sm:$0xff] %v475
    %524 = vst [vmem:[#allocation8 + $0x58] sm:$0xff] %v480
    %525 = vst [vmem:[#allocation8 + $0x60] sm:$0xff] %v485
    %526 = vst [vmem:[#allocation8 + $0x68] sm:$0xff] %v490
    %527 = vst [vmem:[#allocation8 + $0x70] sm:$0xff] %v495
    %528 = vst [vmem:[#allocation8 + $0x78] sm:$0xff] %v500
    %529 = vst [vmem:[#allocation8 + $0x80] sm:$0xff] %v512
    // Predicated region
    $region18: #{tpu_custom_call.1} parent=1 // pred_check
      _
    $region19: #{tpu_custom_call.1} parent=1 // pred_check_branch
      %531 = sbr.rel (0) target = $region21
    $region20: #{tpu_custom_call.1} parent=1 // pred_region
      %s533 = ssub.s32 512, 512
      %534 = vsyncadd [#allocation4], %s533
      %s535 = sshll.u32 [#allocation7], 4
      %s536 = int_to_ptr.vmem [resolvable:$true] %s535
      %541 = dma.vmem_to_hbm [thread:$0]  %s536, 512, %s2, [#allocation4], 128, 128, 8
    $region21: #{tpu_custom_call.1} parent=1 // pred_fallthru
      _
    // Predicated region
    $region22: #{tpu_custom_call.1} parent=1 // pred_check
      _
    $region23: #{tpu_custom_call.1} parent=1 // pred_check_branch
      %543 = sbr.rel (0) target = $region25
    $region24: #{tpu_custom_call.1} parent=1 // pred_region
      %s545 = ssub.s32 2176, 2176
      %546 = vsyncadd [#allocation9], %s545
      %s547 = sshll.u32 [#allocation8], 4
      %s548 = int_to_ptr.vmem [resolvable:$true] %s547
      %553 = dma.vmem_to_hbm [thread:$0]  %s548, 2176, %s3, [#allocation9], 128, 128, 8
    $region25: #{tpu_custom_call.1} parent=1 // pred_fallthru
      _
    // Predicated region
    $region26: #{tpu_custom_call.1} parent=1 // pred_check
      _
    $region27: #{tpu_custom_call.1} parent=1 // pred_check_branch
      %555 = sbr.rel (0) target = $region29
    $region28: #{tpu_custom_call.1} parent=1 // pred_region
      %556 = dma.done [#allocation4], 512
    $region29: #{tpu_custom_call.1} parent=1 // pred_fallthru
      _
    // Predicated region
    $region30: #{tpu_custom_call.1} parent=1 // pred_check
      _
    $region31: #{tpu_custom_call.1} parent=1 // pred_check_branch
      %558 = sbr.rel (0) target = $region33
    $region32: #{tpu_custom_call.1} parent=1 // pred_region
      %559 = dma.done [#allocation9], 2176
    $region33: #{tpu_custom_call.1} parent=1 // pred_fallthru
      _
    %560 = vsyncpa [#allocation3], 1
    %561 = vsyncpa [#allocation6], 1
    %562 = vsyncpa [#allocation4], 1
    %563 = vsyncpa [#allocation9], 1

</llo_original>
